<compile_context>
chip_gen: v7x
topology: tpu7x:2x2x1
jax: 0.10.0
libtpu: 0.0.40
codegen_flags: <defaults>
</compile_context>

<pallas_src>
import jax
import jax.numpy as jnp
from jax.experimental import pallas as pl
from jax.experimental.pallas import tpu as pltpu


def _chomp_copy_kernel(x_ref, o_ref):
    # Aligned fast path: the input BlockSpec already dropped the chomped tail,
    # so this is a plain VMEM tile copy.
    o_ref[...] = x_ref[...]


def _chomp_slice_kernel(x_ref, o_ref):
    # Fallback path: input block covers [0, round_up(T_out,128)) (or full T);
    # drop the residual tail with a static slice (no gather).
    o_ref[...] = x_ref[:, : o_ref.shape[-1]]


def _round_up(x: int, m: int) -> int:
    return ((x + m - 1) // m) * m


def _vmem_capacity_bytes(default: int = 64 << 20) -> int:
    """Physical VMEM per TensorCore; conservative (v7x) default if unknown."""
    try:
        info = pltpu.get_tpu_info()
        cap = getattr(info, "vmem_capacity_bytes", None)
        if cap:
            return int(cap)
    except Exception:
        pass
    return default


def _pick_row_block(rows: int, per_row_bytes: int, budget: int, sub: int) -> int:
    """Row-block size for the flattened (rows, T) view.

    Picks the fewest grid steps whose double-buffered footprint fits `budget`,
    while preferring >= 8 (and even) steps so the pipeline has work to overlap
    and v7x's two TensorCores get a balanced split.  Result is either == rows
    (full-dim, exempt from the sublane rule) or a multiple of `sub`.
    """
    if rows <= sub:
        return rows  # full second-to-last dim -> exempt from the 8-rule
    min_steps = max(1, pl.cdiv(rows * per_row_bytes, max(1, budget)))
    want = 8 if rows >= 8 * sub else 2
    steps = max(min_steps, want)
    if steps > 1 and steps % 2:
        steps += 1  # even split across v7x's 2 TensorCores
    r = pl.cdiv(rows, steps)
    r = _round_up(r, sub)  # sublane-packing multiple (8 f32 / 16 bf16 / 32 int8)
    return min(r, rows)


def chomp1d(x: jax.Array, chomp_size: int) -> jax.Array:
    """Pallas implementation of Chomp1d.forward: x[:, :, :, :-chomp_size]."""
    assert x.ndim == 4, "Chomp1d expects a 4-D NCVT tensor"
    N, C, V, T = x.shape
    # Note: PyTorch's own `:-0` slicing is broken for chomp_size == 0, so we
    # require a strictly positive chomp that leaves at least one time step.
    assert 0 < chomp_size < T, "chomp_size must be in (0, T)"
    T_out = T - chomp_size

    rows = N * C * V
    itemsize = x.dtype.itemsize
    x2 = x.reshape(rows, T)  # free metadata reshape of a contiguous array

    # Aligned path: slice the time axis directly at the BlockSpec (last block
    # dim must be a multiple of 128 when it differs from the full dim).  The
    # chomped tail is then never read from HBM at all.
    aligned = (T_out % 128) == 0
    if aligned:
        t_in = T_out
        kernel = _chomp_copy_kernel
    else:
        # Read only up to the next 128-lane boundary past T_out, not all of T.
        t_in = min(T, _round_up(T_out, 128))
        kernel = _chomp_slice_kernel

    # Sublane packing for this dtype: 8 rows f32, 16 bf16, 32 int8.
    sub = 8 * max(1, 4 // max(1, itemsize))

    # Generation-aware VMEM budget.
    phys_vmem = _vmem_capacity_bytes()
    if phys_vmem >= (128 << 20):          # v5e / v6e: 128 MiB physical
        gen_cap = 96 << 20
    else:                                  # v7x: 64 MiB per TensorCore
        gen_cap = min((phys_vmem * 3) // 4, 48 << 20)
    budget = (gen_cap * 3) // 4            # headroom for compiler scratch

    # Double-buffered (in + out) bytes per row of the flattened view.
    per_row_bytes = 2 * (t_in + T_out) * itemsize
    R = _pick_row_block(rows, per_row_bytes, budget, sub)
    grid = (pl.cdiv(rows, R),)             # partial trailing block is fine

    footprint = R * per_row_bytes
    vmem_limit = int(min(gen_cap, max(2 * footprint, 16 << 20)))

    bytes_accessed = rows * (t_in + T_out) * itemsize

    out2 = pl.pallas_call(
        kernel,
        out_shape=jax.ShapeDtypeStruct((rows, T_out), x.dtype),
        grid_spec=pltpu.PrefetchScalarGridSpec(
            num_scalar_prefetch=0,
            grid=grid,
            in_specs=[pl.BlockSpec((R, t_in), lambda i: (i, 0))],
            out_specs=pl.BlockSpec((R, T_out), lambda i: (i, 0)),
        ),
        compiler_params=pltpu.CompilerParams(
            dimension_semantics=("parallel",),
            vmem_limit_bytes=vmem_limit,
        ),
        cost_estimate=pl.CostEstimate(
            flops=0, transcendentals=0, bytes_accessed=bytes_accessed),
    )(x2)

    return out2.reshape(N, C, V, T_out)


if __name__ == "__main__":
    key = jax.random.PRNGKey(0)

    # Test 1: small STGODE-like shape, unaligned T_out (fallback slice path,
    # input block covers full T since round_up(T_out,128) > T).
    N, C, V, T = 2, 4, 16, 16
    chomp_size = 3
    x = jax.random.normal(key, (N, C, V, T), dtype=jnp.float32)
    out = jax.block_until_ready(chomp1d(x, chomp_size))
    ref = x[:, :, :, :-chomp_size]
    assert out.shape == (N, C, V, T - chomp_size), out.shape
    assert out.dtype == x.dtype
    assert jnp.array_equal(out, ref), "Pallas Chomp1d mismatch (fallback path)"

    # Test 2: lane-aligned T_out (BlockSpec-sliced fast path: tail never read).
    N2, C2, V2, T2 = 2, 4, 16, 256
    chomp2 = 128  # T_out = 128 -> aligned path
    x2 = jax.random.normal(jax.random.PRNGKey(1), (N2, C2, V2, T2), dtype=jnp.float32)
    out2 = jax.block_until_ready(chomp1d(x2, chomp2))
    ref2 = x2[:, :, :, :-chomp2]
    assert out2.shape == (N2, C2, V2, T2 - chomp2), out2.shape
    assert jnp.array_equal(out2, ref2), "Pallas Chomp1d mismatch (aligned path)"

    # Test 3: large chomp, unaligned -> input block shrunk to
    # round_up(T_out,128) < T (tail beyond the 128 boundary never read).
    N3, C3, V3, T3 = 1, 2, 8, 512
    chomp3 = 312  # T_out = 200, input block time dim = 256
    x3 = jax.random.normal(jax.random.PRNGKey(2), (N3, C3, V3, T3), dtype=jnp.float32)
    out3 = jax.block_until_ready(chomp1d(x3, chomp3))
    ref3 = x3[:, :, :, :-chomp3]
    assert out3.shape == (N3, C3, V3, T3 - chomp3), out3.shape
    assert jnp.array_equal(out3, ref3), "Pallas Chomp1d mismatch (shrunk-block path)"

    print("KERNEL_OK")
</pallas_src>

<mosaic_0001>
module attributes {stable_mosaic.version = 11 : i64} {
  func.func @_chomp_slice_kernel(%arg0: i32, %arg1: memref<16x16xf32, #tpu.memory_space<vmem>>, %arg2: memref<16x13xf32, #tpu.memory_space<vmem>>) attributes {dimension_semantics = [#tpu.dimension_semantics<parallel>], iteration_bounds = array<i64: 8>, scalar_prefetch = 0 : i64, scratch_operands = 0 : i64, tpu.core_type = #tpu.core_type<tc>, window_params = [{transform_indices = @transform_0, window_bounds = array<i64: 16, 16>}, {transform_indices = @transform_1, window_bounds = array<i64: 16, 13>}]} {
    %c0 = arith.constant 0 : index
    %c0_0 = arith.constant 0 : index
    %0 = vector.load %arg1[%c0, %c0_0] : memref<16x16xf32, #tpu.memory_space<vmem>>, vector<16x13xf32>
    %c0_1 = arith.constant 0 : index
    %c0_2 = arith.constant 0 : index
    %1 = vector.load %arg2[%c0_1, %c0_2] : memref<16x13xf32, #tpu.memory_space<vmem>>, vector<16x13xf32>
    tpu.vector_store %arg2[%c0_1, %c0_2], %0 {strides = array<i32>} : memref<16x13xf32, #tpu.memory_space<vmem>>, vector<16x13xf32>,
    return
  }
  func.func @transform_0(%arg0: i32) -> (i32, i32) {
    %c0_i32 = arith.constant 0 : i32
    %c0_i32_0 = arith.constant 0 : i32
    return %arg0, %c0_i32 : i32, i32
  }
  func.func @transform_1(%arg0: i32) -> (i32, i32) {
    %c0_i32 = arith.constant 0 : i32
    %c0_i32_0 = arith.constant 0 : i32
    return %arg0, %c0_i32 : i32, i32
  }
}

</mosaic_0001>

<llo_original>
// kernel: tpu_custom_call.1
$region0: #{tpu_custom_call.1}
  #allocation0 [shape = 'u32[]', space=smem, size = 0x4, offset = 0x4, fixed_abs, tag = 'smem constant byte address 0x4 - core index']
  #allocation1 [shape = 'u32[144,128]{1,0:T(1,128)}', space=vmem, size = 0x12000, scoped, tag = 'internal scratch']
  %s0 = inlined_call_operand.vmem [shape: f32[128,16], index: 0, kind: input, shape index: {}]
  %s1 = inlined_call_operand.vmem [shape: f32[128,13], index: 1, kind: output, shape index: {}]
  %s2 = sld [smem:[#allocation0]]
  $region37: #{tpu_custom_call.1} parent=0
    _
  %s4 = ssub.s32 1, %s2
  %s5 = scalar_select 0, %s4, %s2
  loop: start=0, step=1, limit=10
  $region2: #{tpu_custom_call.1} parent=0 // loop_pre_header
    _
  $region3: #{tpu_custom_call.1} parent=0 // loop_header
    %s7 = sphi 0, %s11
    %p8 = scmp.ge.s32.totalorder %s7, 10
    %s17 = sphi 0, %s19
    %s20 = sphi 0, %s17
    %s21 = sphi 0, %s20
    %s37 = sphi 0, %s21
    %s43 = sphi 0, %s45
    %s46 = sphi 0, %s43
    %s47 = sphi 0, %s46
    %s63 = sphi 0, %s47
  $region4: #{tpu_custom_call.1} parent=0 // loop_header_branch
    %10 = sbr.rel (%p8) target = $region8
  $region5: #{tpu_custom_call.1} parent=0 // loop_body
    %s12 = ssub.s32 %s7, 1
    %s13 = ssub.s32 %s7, 2
    %s14 = sadd.s32 %s7, 1
    %s15 = ssub.s32 %s7, %s14
    %p16 = scmp.eq.s32.totalorder %s15, 0
    %s18 = sadd.s32 %s17, 1
    %s19 = scalar_select %p16, %s17, %s18
    %p22 = pneg %p16
    %p23 = scmp.eq.s32.totalorder %s7, 7
    %p24 = por %p22, %p23
    %p25 = scmp.ne.s32.totalorder %s17, %s20
    %p26 = scmp.eq.s32.totalorder %s7, 0
    %p27 = por %p25, %p26
    %p28 = scmp.ne.s32.totalorder %s17, %s20
    %p29 = scmp.eq.s32.totalorder %s12, 7
    %p30 = por %p28, %p29
    %p31 = scmp.ne.s32.totalorder %s20, %s21
    %p32 = scmp.eq.s32.totalorder %s12, 0
    %p33 = por %p31, %p32
    %p34 = scmp.ne.s32.totalorder %s20, %s21
    %p35 = scmp.eq.s32.totalorder %s13, 7
    %p36 = por %p34, %p35
    %p38 = scmp.ne.s32.totalorder %s21, %s37
    %p39 = scmp.eq.s32.totalorder %s13, 0
    %p40 = por %p38, %p39
    %s41 = ssub.s32 %s7, %s14
    %p42 = scmp.eq.s32.totalorder %s41, 0
    %s44 = sadd.s32 %s43, 1
    %s45 = scalar_select %p42, %s43, %s44
    %p48 = pneg %p42
    %p49 = scmp.eq.s32.totalorder %s7, 7
    %p50 = por %p48, %p49
    %p51 = scmp.ne.s32.totalorder %s43, %s46
    %p52 = scmp.eq.s32.totalorder %s7, 0
    %p53 = por %p51, %p52
    %p54 = scmp.ne.s32.totalorder %s43, %s46
    %p55 = scmp.eq.s32.totalorder %s12, 7
    %p56 = por %p54, %p55
    %p57 = scmp.ne.s32.totalorder %s46, %s47
    %p58 = scmp.eq.s32.totalorder %s12, 0
    %p59 = por %p57, %p58
    %p60 = scmp.ne.s32.totalorder %s46, %s47
    %p61 = scmp.eq.s32.totalorder %s13, 7
    %p62 = por %p60, %p61
    %p64 = scmp.ne.s32.totalorder %s47, %s63
    %p65 = scmp.eq.s32.totalorder %s13, 0
    %p66 = por %p64, %p65
    %p67 = scmp.le.s32.totalorder 1, %s7
    %p68 = scmp.lt.s32.totalorder %s7, 9
    %p69 = pnand %p67, %p68
    %p70 = pneg %p69
    // Predicated region
    $region9: #{tpu_custom_call.1} parent=5 // pred_check
      _
    $region10: #{tpu_custom_call.1} parent=5 // pred_check_branch
      %72 = sbr.rel (%p69) target = $region12
    $region11: #{tpu_custom_call.1} parent=5 // pred_region
      %s73 = ssub.s32 %s7, 1
    $region12: #{tpu_custom_call.1} parent=5 // pred_fallthru
      _
    %p74 = scmp.lt.s32.totalorder %s7, 8
    // Predicated region
    $region13: #{tpu_custom_call.1} parent=5 // pred_check
      %p75 = pneg %p74
    $region14: #{tpu_custom_call.1} parent=5 // pred_check_branch
      %77 = sbr.rel (%p75) target = $region16
    $region15: #{tpu_custom_call.1} parent=5 // pred_region
      // Predicated region
      $region17: #{tpu_custom_call.1} parent=15 // pred_check
        %p78 = pneg %p27
      $region18: #{tpu_custom_call.1} parent=15 // pred_check_branch
        %80 = sbr.rel (%p78) target = $region20
      $region19: #{tpu_custom_call.1} parent=15 // pred_region
        %s81 = smul.u32 2, %s7
        %p82 = scmp.lt.s32.totalorder %s81, 15
        %s83 = scalar_select %p82, %s81, 15
        %s84 = smul.addr %s83, 8
        %s85 = scalar_lea.vmem %s0, %s84
        %s86 = smul.u32 2, %s7
      $region20: #{tpu_custom_call.1} parent=15 // pred_fallthru
        _
    $region16: #{tpu_custom_call.1} parent=5 // pred_fallthru
      _
    %p87 = scmp.le.s32.totalorder 1, %s7
    %p88 = scmp.lt.s32.totalorder %s7, 9
    %p89 = pnand %p87, %p88
    %p90 = pneg %p89
    // Predicated region
    $region21: #{tpu_custom_call.1} parent=5 // pred_check
      _
    $region22: #{tpu_custom_call.1} parent=5 // pred_check_branch
      %92 = sbr.rel (%p89) target = $region24
    $region23: #{tpu_custom_call.1} parent=5 // pred_region
      %s93 = ssub.s32 %s7, 1
      %s94 = smul.u32 2, %s12
      %p95 = scmp.lt.s32.totalorder %s94, 15
      %s96 = scalar_select %p95, %s94, 15
      %s97 = smul.addr %s96, 8
      %s98 = scalar_lea.vmem %s0, %s97
      %p99 = pneg %p33
      %p100 = pneg %p30
      %p101 = pneg %p59
      %p102 = pneg %p56
      %s103 = smul.u32 2, %s12
      %p104 = scmp.lt.s32.totalorder %s103, 15
      %s105 = scalar_select %p104, %s103, 15
      %s106 = smul.addr %s105, 8
      %s107 = scalar_lea.vmem %s1, %s106
      %s108 = smul.u32 2, %s12
      %p109 = scmp.lt.s32.totalorder %s108, 15
      %s110 = scalar_select %p109, %s108, 15
      %s111 = smul.addr %s110, 8
      %s112 = scalar_lea.vmem %s0, %s111
      %s113 = smul.u32 2, %s12
      %s114 = smul.u32 2, %s12
      %p115 = scmp.lt.s32.totalorder %s114, 15
      %s116 = scalar_select %p115, %s114, 15
      %s117 = smul.addr %s116, 8
      %s118 = scalar_lea.vmem %s1, %s117
      %s119 = smul.u32 2, %s12
      %v120 = vld [vmem:[%s112] sm:$0xff]
      %v121 = vld [vmem:[%s112 + $0x8] sm:$0xff]
      %vm122 = vcmask 105472
      %123 = vst.msk [vmem:[%s118] sm:$0xff] %vm122, %v120
      %124 = vst.msk [vmem:[%s118 + $0x8] sm:$0xff] %vm122, %v121
      %s125 = smul.u32 2, %s12
      %p126 = scmp.lt.s32.totalorder %s125, 15
      %s127 = scalar_select %p126, %s125, 15
      %s128 = smul.addr %s127, 8
      %s129 = scalar_lea.vmem %s1, %s128
      // Predicated region
      $region25: #{tpu_custom_call.1} parent=23 // pred_check
        %p130 = pneg %p56
      $region26: #{tpu_custom_call.1} parent=23 // pred_check_branch
        %132 = sbr.rel (%p130) target = $region28
      $region27: #{tpu_custom_call.1} parent=23 // pred_region
        %s133 = smul.u32 2, %s12
      $region28: #{tpu_custom_call.1} parent=23 // pred_fallthru
        _
    $region24: #{tpu_custom_call.1} parent=5 // pred_fallthru
      _
    %p134 = scmp.le.s32.totalorder 2, %s7
    // Predicated region
    $region29: #{tpu_custom_call.1} parent=5 // pred_check
      %p135 = pneg %p134
    $region30: #{tpu_custom_call.1} parent=5 // pred_check_branch
      %137 = sbr.rel (%p135) target = $region32
    $region31: #{tpu_custom_call.1} parent=5 // pred_region
      %s138 = ssub.s32 %s7, 2
      // Predicated region
      $region33: #{tpu_custom_call.1} parent=31 // pred_check
        %p139 = pneg %p62
      $region34: #{tpu_custom_call.1} parent=31 // pred_check_branch
        %141 = sbr.rel (%p139) target = $region36
      $region35: #{tpu_custom_call.1} parent=31 // pred_region
        %s142 = smul.u32 2, %s13
        %p143 = scmp.lt.s32.totalorder %s142, 15
        %s144 = scalar_select %p143, %s142, 15
        %s145 = smul.addr %s144, 8
        %s146 = scalar_lea.vmem %s1, %s145
      $region36: #{tpu_custom_call.1} parent=31 // pred_fallthru
        _
    $region32: #{tpu_custom_call.1} parent=5 // pred_fallthru
      _
  $region6: #{tpu_custom_call.1} parent=0 // loop_footer
    %s11 = sadd.s32 1, %s7
  $region7: #{tpu_custom_call.1} parent=0 // loop_footer_branch
    %6 = sbr.rel target = $region3
  $region8: #{tpu_custom_call.1} parent=0 // loop_exit
    _

</llo_original>
